<compile_context>
chip_gen: v6e
topology: v6e:2x2x1
jax: 0.10.0
libtpu: 0.0.40
codegen_flags: <defaults>
</compile_context>

<pallas_src>
import jax
import jax.numpy as jnp
from jax.experimental import pallas as pl
from jax.experimental.pallas import tpu as pltpu

EPS = 1e-5
KH = KW = 3       # 3x3 convs


def _expand_conv3x3(w, Wdim):
    """(KH, KW, Ci, Co) -> (KH, Wdim*Ci, Wdim*Co).

    Folds the width tap (dx) and the width zero-padding into a banded block matrix so
    that, for each kernel row dy, the whole conv row is a single lane-dense matmul
    (H, Wdim*Ci) x (Wdim*Ci, Wdim*Co)."""
    KH_, KW_, Ci, Co = w.shape
    cols = jnp.arange(Wdim)
    # E[dx, i, x] = 1 iff input column i == output column x + dx - 1 (pad=1);
    # out-of-range taps simply have no row -> width padding handled implicitly.
    E = (cols[None, :, None] == cols[None, None, :]
         + jnp.arange(KW_)[:, None, None] - 1).astype(w.dtype)
    big = jnp.einsum('dix,ydco->yicxo', E, w)          # (KH, Wdim, Ci, Wdim, Co)
    return big.reshape(KH_, Wdim * Ci, Wdim * Co)


def _expand_conv1x1(w, Wdim):
    """(1, 1, Ci, Co) -> block-diagonal (Wdim*Ci, Wdim*Co) for the 1x1 downsample."""
    Ci, Co = w.shape[-2], w.shape[-1]
    E = jnp.eye(Wdim, dtype=w.dtype)
    return jnp.einsum('ix,co->icxo', E, w[0, 0]).reshape(Wdim * Ci, Wdim * Co)


def _make_fused_block_kernel(H, W, Cin, Cout, has_downsample):
    """Fused conv3x3+BN+ReLU -> conv3x3+BN -> (+shortcut) -> ReLU (stride 1)."""

    def kernel(*refs):
        if has_downsample:
            (x_ref, w1_ref, b1_ref, w2_ref, b2_ref, wd_ref,
             o_ref, xpad_ref, midpad_ref) = refs
        else:
            (x_ref, w1_ref, b1_ref, w2_ref, b2_ref,
             o_ref, xpad_ref, midpad_ref) = refs

        f32, bf16 = jnp.float32, jnp.bfloat16

        # ---- zero only the top/bottom halo rows (width padding is in the weights).
        xpad_ref[0:1, :] = jnp.zeros((1, W * Cin), bf16)
        xpad_ref[H + 1:H + 2, :] = jnp.zeros((1, W * Cin), bf16)
        midpad_ref[0:1, :] = jnp.zeros((1, W * Cout), bf16)
        midpad_ref[H + 1:H + 2, :] = jnp.zeros((1, W * Cout), bf16)

        # ---- single bf16 cast of the activation into the row-padded scratch.
        xpad_ref[1:1 + H, :] = x_ref[...].astype(bf16)

        # ---- conv1 + folded BN1 + ReLU: 3 lane-dense matmuls, f32 accumulation.
        acc1 = jnp.zeros((H, W * Cout), f32)
        for dy in range(KH):
            acc1 = acc1 + jnp.dot(xpad_ref[dy:dy + H, :], w1_ref[dy],
                                  preferred_element_type=f32)
        mid = jnp.maximum(acc1 + b1_ref[...], 0.0)
        midpad_ref[1:1 + H, :] = mid.astype(bf16)

        # ---- shortcut path (b2_ref already contains the folded conv2+downsample bias).
        if has_downsample:
            acc2 = jnp.dot(xpad_ref[1:1 + H, :], wd_ref[...],
                           preferred_element_type=f32) + b2_ref[...]
        else:
            acc2 = x_ref[...] + b2_ref[...]            # identity stays f32

        # ---- conv2 + folded BN2 + residual + ReLU.
        for dy in range(KH):
            acc2 = acc2 + jnp.dot(midpad_ref[dy:dy + H, :], w2_ref[dy],
                                  preferred_element_type=f32)
        o_ref[...] = jnp.maximum(acc2, 0.0).astype(o_ref.dtype)

    return kernel


def fold_bn(gamma, beta, running_mean, running_var, eps=EPS):
    """Eval-mode BatchNorm folded to a per-channel (scale, bias)."""
    scale = gamma * jax.lax.rsqrt(running_var + eps)
    bias = beta - running_mean * scale
    return scale, bias


@jax.jit
def residual_block_pallas(x_nhwc, params):
    """params = (w1, s1, b1, w2, s2, b2[, wd, sd, bd]); w*: HWIO; s*/b*: folded BN."""
    has_downsample = len(params) == 9
    if has_downsample:
        (w1, s1, b1, w2, s2, b2, wd, sd, bd) = params
    else:
        (w1, s1, b1, w2, s2, b2) = params

    N, H, W, Cin = x_nhwc.shape
    Cout = w1.shape[-1]
    WC_in, WC_out = W * Cin, W * Cout

    # Fold BN scale into the conv weights, expand to banded lane-dense matrices,
    # pre-cast matmul operands to bf16; biases stay f32 and are tiled across width.
    w1big = _expand_conv3x3(w1 * s1, W).astype(jnp.bfloat16)
    w2big = _expand_conv3x3(w2 * s2, W).astype(jnp.bfloat16)
    b1t = jnp.tile(b1, W).reshape(1, WC_out).astype(jnp.float32)
    if has_downsample:
        wdbig = _expand_conv1x1(wd * sd, W).astype(jnp.bfloat16)
        b2t = jnp.tile(b2 + bd, W).reshape(1, WC_out).astype(jnp.float32)
    else:
        b2t = jnp.tile(b2, W).reshape(1, WC_out).astype(jnp.float32)

    # Lane-dense activation layout: (N, H, W*Cin).
    x_lane = x_nhwc.reshape(N, H, WC_in)

    inputs = [x_lane, w1big, b1t, w2big, b2t]
    in_specs = [
        pl.BlockSpec((None, H, WC_in), lambda n: (n, 0, 0)),            # x, per-image
        pl.BlockSpec((KH, WC_in, WC_out), lambda n: (0, 0, 0)),         # conv1 (banded)
        pl.BlockSpec((1, WC_out), lambda n: (0, 0)),                    # bn1 bias (tiled)
        pl.BlockSpec((KH, WC_out, WC_out), lambda n: (0, 0, 0)),        # conv2 (banded)
        pl.BlockSpec((1, WC_out), lambda n: (0, 0)),                    # bn2(+ds) bias
    ]
    if has_downsample:
        inputs += [wdbig]
        in_specs += [pl.BlockSpec((WC_in, WC_out), lambda n: (0, 0))]   # 1x1 downsample

    kernel = _make_fused_block_kernel(H, W, Cin, Cout, has_downsample)

    flops_per_img = 2 * H * WC_in * WC_out * KH + 2 * H * WC_out * WC_out * KH
    if has_downsample:
        flops_per_img += 2 * H * WC_in * WC_out
    bytes_accessed = int(
        x_lane.size * x_lane.dtype.itemsize
        + sum(int(a.size) * a.dtype.itemsize for a in inputs[1:])
        + N * H * WC_out * x_nhwc.dtype.itemsize)

    out_lane = pl.pallas_call(
        kernel,
        out_shape=jax.ShapeDtypeStruct((N, H, WC_out), x_nhwc.dtype),
        grid=(N,),
        in_specs=in_specs,
        out_specs=pl.BlockSpec((None, H, WC_out), lambda n: (n, 0, 0)),  # lane-dense out
        scratch_shapes=[
            pltpu.VMEM((H + 2, WC_in), jnp.bfloat16),     # row-padded input (bf16 once)
            pltpu.VMEM((H + 2, WC_out), jnp.bfloat16),    # row-padded conv1 output
        ],
        compiler_params=pltpu.CompilerParams(dimension_semantics=("parallel",)),
        cost_estimate=pl.CostEstimate(flops=N * flops_per_img, transcendentals=0,
                                      bytes_accessed=bytes_accessed),
    )(*inputs)

    return out_lane.reshape(N, H, W, Cout)


def residual_block_reference(x_nhwc, params):
    """Pure-JAX (lax conv, f32) reference matching the PyTorch module in eval mode."""
    has_downsample = len(params) == 9
    if has_downsample:
        (w1, s1, b1, w2, s2, b2, wd, sd, bd) = params
    else:
        (w1, s1, b1, w2, s2, b2) = params
    dn = ("NHWC", "HWIO", "NHWC")

    def conv(x, w, pad):
        return jax.lax.conv_general_dilated(
            x, w, (1, 1), [(pad, pad), (pad, pad)], dimension_numbers=dn)

    out = jnp.maximum(conv(x_nhwc, w1, 1) * s1 + b1, 0.0)
    out = conv(out, w2, 1) * s2 + b2
    identity = conv(x_nhwc, wd, 0) * sd + bd if has_downsample else x_nhwc
    return jnp.maximum(out + identity, 0.0)


if __name__ == "__main__":
    # Module config: in_channels != out_channels -> downsample path active.
    N, Cin, H, W = 2, 4, 16, 16
    Cout = 8

    key = jax.random.PRNGKey(0)
    ks = jax.random.split(key, 12)

    # PyTorch-style NCHW input, transposed to NHWC for the kernel.
    x_nchw = jax.random.normal(ks[0], (N, Cin, H, W), jnp.float32)
    x_nhwc = jnp.transpose(x_nchw, (0, 2, 3, 1))

    # Synthetic parameters (HWIO conv weights; eval-mode BN with non-trivial stats).
    w1 = 0.1 * jax.random.normal(ks[1], (3, 3, Cin, Cout), jnp.float32)
    w2 = 0.1 * jax.random.normal(ks[2], (3, 3, Cout, Cout), jnp.float32)
    wd = 0.1 * jax.random.normal(ks[3], (1, 1, Cin, Cout), jnp.float32)

    def bn_params(k):
        kg, kb, km, kv = jax.random.split(k, 4)
        gamma = 1.0 + 0.1 * jax.random.normal(kg, (Cout,), jnp.float32)
        beta = 0.1 * jax.random.normal(kb, (Cout,), jnp.float32)
        mean = 0.1 * jax.random.normal(km, (Cout,), jnp.float32)
        var = 1.0 + 0.1 * jnp.abs(jax.random.normal(kv, (Cout,), jnp.float32))
        return fold_bn(gamma, beta, mean, var)

    s1, b1 = bn_params(ks[4])
    s2, b2 = bn_params(ks[5])
    sd, bd = bn_params(ks[6])
    params = (w1, s1, b1, w2, s2, b2, wd, sd, bd)

    out = jax.block_until_ready(residual_block_pallas(x_nhwc, params))
    ref = residual_block_reference(x_nhwc, params)
    assert out.shape == (N, H, W, Cout)
    max_err = float(jnp.max(jnp.abs(out - ref)))
    # bf16 matmul operands + f32 accumulation vs the pure-f32 reference.
    assert max_err < 5e-2, f"max abs err = {max_err}"

    # Also exercise the in_channels == out_channels (identity shortcut) branch.
    x2 = jax.random.normal(ks[7], (N, H, W, Cout), jnp.float32)
    w1b = 0.1 * jax.random.normal(ks[8], (3, 3, Cout, Cout), jnp.float32)
    w2b = 0.1 * jax.random.normal(ks[9], (3, 3, Cout, Cout), jnp.float32)
    s1b, b1b = bn_params(ks[10])
    s2b, b2b = bn_params(ks[11])
    params2 = (w1b, s1b, b1b, w2b, s2b, b2b)
    out2 = jax.block_until_ready(residual_block_pallas(x2, params2))
    ref2 = residual_block_reference(x2, params2)
    max_err2 = float(jnp.max(jnp.abs(out2 - ref2)))
    assert max_err2 < 5e-2, f"max abs err (identity path) = {max_err2}"

    print("KERNEL_OK")
</pallas_src>

<mosaic_0001>
module attributes {stable_mosaic.version = 11 : i64} {
  func.func @kernel(%arg0: i32, %arg1: memref<1x16x64xf32, #tpu.memory_space<vmem>>, %arg2: memref<3x64x128xbf16, #tpu.memory_space<vmem>>, %arg3: memref<1x128xf32, #tpu.memory_space<vmem>>, %arg4: memref<3x128x128xbf16, #tpu.memory_space<vmem>>, %arg5: memref<1x128xf32, #tpu.memory_space<vmem>>, %arg6: memref<64x128xbf16, #tpu.memory_space<vmem>>, %arg7: memref<1x16x128xf32, #tpu.memory_space<vmem>>, %arg8: memref<18x64xbf16, #tpu.memory_space<vmem>>, %arg9: memref<18x128xbf16, #tpu.memory_space<vmem>>) attributes {dimension_semantics = [#tpu.dimension_semantics<parallel>], iteration_bounds = array<i64: 2>, scalar_prefetch = 0 : i64, scratch_operands = 2 : i64, tpu.core_type = #tpu.core_type<tc>, window_params = [{transform_indices = @transform_0, window_bounds = array<i64: 1, 16, 64>}, {pipeline_mode = #tpu.pipeline_mode<synchronous>, transform_indices = @transform_1, window_bounds = array<i64: 3, 64, 128>}, {pipeline_mode = #tpu.pipeline_mode<synchronous>, transform_indices = @transform_2, window_bounds = array<i64: 1, 128>}, {pipeline_mode = #tpu.pipeline_mode<synchronous>, transform_indices = @transform_3, window_bounds = array<i64: 3, 128, 128>}, {pipeline_mode = #tpu.pipeline_mode<synchronous>, transform_indices = @transform_4, window_bounds = array<i64: 1, 128>}, {pipeline_mode = #tpu.pipeline_mode<synchronous>, transform_indices = @transform_5, window_bounds = array<i64: 64, 128>}, {transform_indices = @transform_6, window_bounds = array<i64: 1, 16, 128>}]} {
    %cst = arith.constant 0.000000e+00 : bf16
    %0 = vector.broadcast %cst : bf16 to vector<1x64xbf16>
    %c0 = arith.constant 0 : index
    %c0_0 = arith.constant 0 : index
    %1 = vector.load %arg8[%c0, %c0_0] : memref<18x64xbf16, #tpu.memory_space<vmem>>, vector<1x64xbf16>
    tpu.vector_store %arg8[%c0, %c0_0], %0 {strides = array<i32>} : memref<18x64xbf16, #tpu.memory_space<vmem>>, vector<1x64xbf16>,
    %cst_1 = arith.constant 0.000000e+00 : bf16
    %2 = vector.broadcast %cst_1 : bf16 to vector<1x64xbf16>
    %c17 = arith.constant 17 : index
    %c0_2 = arith.constant 0 : index
    %3 = vector.load %arg8[%c17, %c0_2] : memref<18x64xbf16, #tpu.memory_space<vmem>>, vector<1x64xbf16>
    tpu.vector_store %arg8[%c17, %c0_2], %2 {strides = array<i32>} : memref<18x64xbf16, #tpu.memory_space<vmem>>, vector<1x64xbf16>,
    %cst_3 = arith.constant 0.000000e+00 : bf16
    %4 = vector.broadcast %cst_3 : bf16 to vector<1x128xbf16>
    %c0_4 = arith.constant 0 : index
    %c0_5 = arith.constant 0 : index
    %5 = vector.load %arg9[%c0_4, %c0_5] : memref<18x128xbf16, #tpu.memory_space<vmem>>, vector<1x128xbf16>
    tpu.vector_store %arg9[%c0_4, %c0_5], %4 {strides = array<i32>} : memref<18x128xbf16, #tpu.memory_space<vmem>>, vector<1x128xbf16>,
    %cst_6 = arith.constant 0.000000e+00 : bf16
    %6 = vector.broadcast %cst_6 : bf16 to vector<1x128xbf16>
    %c17_7 = arith.constant 17 : index
    %c0_8 = arith.constant 0 : index
    %7 = vector.load %arg9[%c17_7, %c0_8] : memref<18x128xbf16, #tpu.memory_space<vmem>>, vector<1x128xbf16>
    tpu.vector_store %arg9[%c17_7, %c0_8], %6 {strides = array<i32>} : memref<18x128xbf16, #tpu.memory_space<vmem>>, vector<1x128xbf16>,
    %c0_9 = arith.constant 0 : index
    %c0_10 = arith.constant 0 : index
    %c0_11 = arith.constant 0 : index
    %8 = vector.load %arg1[%c0_9, %c0_10, %c0_11] : memref<1x16x64xf32, #tpu.memory_space<vmem>>, vector<1x16x64xf32>
    %9 = vector.shape_cast %8 : vector<1x16x64xf32> to vector<16x64xf32>
    %10 = arith.truncf %9 : vector<16x64xf32> to vector<16x64xbf16>
    %c1 = arith.constant 1 : index
    %c0_12 = arith.constant 0 : index
    %11 = vector.load %arg8[%c1, %c0_12] : memref<18x64xbf16, #tpu.memory_space<vmem>>, vector<16x64xbf16>
    tpu.vector_store %arg8[%c1, %c0_12], %10 {strides = array<i32>} : memref<18x64xbf16, #tpu.memory_space<vmem>>, vector<16x64xbf16>,
    %cst_13 = arith.constant 0.000000e+00 : f32
    %12 = vector.broadcast %cst_13 : f32 to vector<16x128xf32>
    %c0_14 = arith.constant 0 : index
    %c0_15 = arith.constant 0 : index
    %13 = vector.load %arg8[%c0_14, %c0_15] : memref<18x64xbf16, #tpu.memory_space<vmem>>, vector<16x64xbf16>
    %c0_16 = arith.constant 0 : index
    %c0_17 = arith.constant 0 : index
    %c0_18 = arith.constant 0 : index
    %14 = vector.load %arg2[%c0_16, %c0_17, %c0_18] : memref<3x64x128xbf16, #tpu.memory_space<vmem>>, vector<1x64x128xbf16>
    %15 = vector.shape_cast %14 : vector<1x64x128xbf16> to vector<64x128xbf16>
    %cst_19 = arith.constant dense<0.000000e+00> : vector<16x128xf32>
    %16 = tpu.matmul %13, %15, %cst_19 {dimension_numbers = #tpu.dot_dimension_numbers<[1], [0], [0], [1], [0, 0, 1, 1], [], []>} : vector<16x64xbf16>, vector<64x128xbf16>, vector<16x128xf32> -> vector<16x128xf32>
    %17 = arith.addf %12, %16 : vector<16x128xf32>
    %c1_20 = arith.constant 1 : index
    %c0_21 = arith.constant 0 : index
    %18 = vector.load %arg8[%c1_20, %c0_21] : memref<18x64xbf16, #tpu.memory_space<vmem>>, vector<16x64xbf16>
    %c1_22 = arith.constant 1 : index
    %c0_23 = arith.constant 0 : index
    %c0_24 = arith.constant 0 : index
    %19 = vector.load %arg2[%c1_22, %c0_23, %c0_24] : memref<3x64x128xbf16, #tpu.memory_space<vmem>>, vector<1x64x128xbf16>
    %20 = vector.shape_cast %19 : vector<1x64x128xbf16> to vector<64x128xbf16>
    %cst_25 = arith.constant dense<0.000000e+00> : vector<16x128xf32>
    %21 = tpu.matmul %18, %20, %cst_25 {dimension_numbers = #tpu.dot_dimension_numbers<[1], [0], [0], [1], [0, 0, 1, 1], [], []>} : vector<16x64xbf16>, vector<64x128xbf16>, vector<16x128xf32> -> vector<16x128xf32>
    %22 = arith.addf %17, %21 : vector<16x128xf32>
    %c2 = arith.constant 2 : index
    %c0_26 = arith.constant 0 : index
    %23 = vector.load %arg8[%c2, %c0_26] : memref<18x64xbf16, #tpu.memory_space<vmem>>, vector<16x64xbf16>
    %c2_27 = arith.constant 2 : index
    %c0_28 = arith.constant 0 : index
    %c0_29 = arith.constant 0 : index
    %24 = vector.load %arg2[%c2_27, %c0_28, %c0_29] : memref<3x64x128xbf16, #tpu.memory_space<vmem>>, vector<1x64x128xbf16>
    %25 = vector.shape_cast %24 : vector<1x64x128xbf16> to vector<64x128xbf16>
    %cst_30 = arith.constant dense<0.000000e+00> : vector<16x128xf32>
    %26 = tpu.matmul %23, %25, %cst_30 {dimension_numbers = #tpu.dot_dimension_numbers<[1], [0], [0], [1], [0, 0, 1, 1], [], []>} : vector<16x64xbf16>, vector<64x128xbf16>, vector<16x128xf32> -> vector<16x128xf32>
    %27 = arith.addf %22, %26 : vector<16x128xf32>
    %c0_31 = arith.constant 0 : index
    %c0_32 = arith.constant 0 : index
    %28 = vector.load %arg3[%c0_31, %c0_32] : memref<1x128xf32, #tpu.memory_space<vmem>>, vector<1x128xf32>
    %29 = vector.broadcast %28 : vector<1x128xf32> to vector<16x128xf32>
    %30 = arith.addf %27, %29 : vector<16x128xf32>
    %cst_33 = arith.constant 0.000000e+00 : f32
    %31 = vector.broadcast %cst_33 : f32 to vector<16x128xf32>
    %32 = arith.maximumf %30, %31 : vector<16x128xf32>
    %33 = arith.truncf %32 : vector<16x128xf32> to vector<16x128xbf16>
    %c1_34 = arith.constant 1 : index
    %c0_35 = arith.constant 0 : index
    %34 = vector.load %arg9[%c1_34, %c0_35] : memref<18x128xbf16, #tpu.memory_space<vmem>>, vector<16x128xbf16>
    tpu.vector_store %arg9[%c1_34, %c0_35], %33 {strides = array<i32>} : memref<18x128xbf16, #tpu.memory_space<vmem>>, vector<16x128xbf16>,
    %c1_36 = arith.constant 1 : index
    %c0_37 = arith.constant 0 : index
    %35 = vector.load %arg8[%c1_36, %c0_37] : memref<18x64xbf16, #tpu.memory_space<vmem>>, vector<16x64xbf16>
    %c0_38 = arith.constant 0 : index
    %c0_39 = arith.constant 0 : index
    %36 = vector.load %arg6[%c0_38, %c0_39] : memref<64x128xbf16, #tpu.memory_space<vmem>>, vector<64x128xbf16>
    %cst_40 = arith.constant dense<0.000000e+00> : vector<16x128xf32>
    %37 = tpu.matmul %35, %36, %cst_40 {dimension_numbers = #tpu.dot_dimension_numbers<[1], [0], [0], [1], [0, 0, 1, 1], [], []>} : vector<16x64xbf16>, vector<64x128xbf16>, vector<16x128xf32> -> vector<16x128xf32>
    %c0_41 = arith.constant 0 : index
    %c0_42 = arith.constant 0 : index
    %38 = vector.load %arg5[%c0_41, %c0_42] : memref<1x128xf32, #tpu.memory_space<vmem>>, vector<1x128xf32>
    %39 = vector.broadcast %38 : vector<1x128xf32> to vector<16x128xf32>
    %40 = arith.addf %37, %39 : vector<16x128xf32>
    %c0_43 = arith.constant 0 : index
    %c0_44 = arith.constant 0 : index
    %41 = vector.load %arg9[%c0_43, %c0_44] : memref<18x128xbf16, #tpu.memory_space<vmem>>, vector<16x128xbf16>
    %c0_45 = arith.constant 0 : index
    %c0_46 = arith.constant 0 : index
    %c0_47 = arith.constant 0 : index
    %42 = vector.load %arg4[%c0_45, %c0_46, %c0_47] : memref<3x128x128xbf16, #tpu.memory_space<vmem>>, vector<1x128x128xbf16>
    %43 = vector.shape_cast %42 : vector<1x128x128xbf16> to vector<128x128xbf16>
    %cst_48 = arith.constant dense<0.000000e+00> : vector<16x128xf32>
    %44 = tpu.matmul %41, %43, %cst_48 {dimension_numbers = #tpu.dot_dimension_numbers<[1], [0], [0], [1], [0, 0, 1, 1], [], []>} : vector<16x128xbf16>, vector<128x128xbf16>, vector<16x128xf32> -> vector<16x128xf32>
    %45 = arith.addf %40, %44 : vector<16x128xf32>
    %c1_49 = arith.constant 1 : index
    %c0_50 = arith.constant 0 : index
    %46 = vector.load %arg9[%c1_49, %c0_50] : memref<18x128xbf16, #tpu.memory_space<vmem>>, vector<16x128xbf16>
    %c1_51 = arith.constant 1 : index
    %c0_52 = arith.constant 0 : index
    %c0_53 = arith.constant 0 : index
    %47 = vector.load %arg4[%c1_51, %c0_52, %c0_53] : memref<3x128x128xbf16, #tpu.memory_space<vmem>>, vector<1x128x128xbf16>
    %48 = vector.shape_cast %47 : vector<1x128x128xbf16> to vector<128x128xbf16>
    %cst_54 = arith.constant dense<0.000000e+00> : vector<16x128xf32>
    %49 = tpu.matmul %46, %48, %cst_54 {dimension_numbers = #tpu.dot_dimension_numbers<[1], [0], [0], [1], [0, 0, 1, 1], [], []>} : vector<16x128xbf16>, vector<128x128xbf16>, vector<16x128xf32> -> vector<16x128xf32>
    %50 = arith.addf %45, %49 : vector<16x128xf32>
    %c2_55 = arith.constant 2 : index
    %c0_56 = arith.constant 0 : index
    %51 = vector.load %arg9[%c2_55, %c0_56] : memref<18x128xbf16, #tpu.memory_space<vmem>>, vector<16x128xbf16>
    %c2_57 = arith.constant 2 : index
    %c0_58 = arith.constant 0 : index
    %c0_59 = arith.constant 0 : index
    %52 = vector.load %arg4[%c2_57, %c0_58, %c0_59] : memref<3x128x128xbf16, #tpu.memory_space<vmem>>, vector<1x128x128xbf16>
    %53 = vector.shape_cast %52 : vector<1x128x128xbf16> to vector<128x128xbf16>
    %cst_60 = arith.constant dense<0.000000e+00> : vector<16x128xf32>
    %54 = tpu.matmul %51, %53, %cst_60 {dimension_numbers = #tpu.dot_dimension_numbers<[1], [0], [0], [1], [0, 0, 1, 1], [], []>} : vector<16x128xbf16>, vector<128x128xbf16>, vector<16x128xf32> -> vector<16x128xf32>
    %55 = arith.addf %50, %54 : vector<16x128xf32>
    %cst_61 = arith.constant 0.000000e+00 : f32
    %56 = vector.broadcast %cst_61 : f32 to vector<16x128xf32>
    %57 = arith.maximumf %55, %56 : vector<16x128xf32>
    %c0_62 = arith.constant 0 : index
    %c0_63 = arith.constant 0 : index
    %c0_64 = arith.constant 0 : index
    %58 = vector.load %arg7[%c0_62, %c0_63, %c0_64] : memref<1x16x128xf32, #tpu.memory_space<vmem>>, vector<1x16x128xf32>
    %59 = vector.shape_cast %58 : vector<1x16x128xf32> to vector<16x128xf32>
    %60 = vector.shape_cast %57 : vector<16x128xf32> to vector<1x16x128xf32>
    tpu.vector_store %arg7[%c0_62, %c0_63, %c0_64], %60 {strides = array<i32>} : memref<1x16x128xf32, #tpu.memory_space<vmem>>, vector<1x16x128xf32>,
    return
  }
  func.func @transform_0(%arg0: i32) -> (i32, i32, i32) {
    %c0_i32 = arith.constant 0 : i32
    %c0_i32_0 = arith.constant 0 : i32
    %c0_i32_1 = arith.constant 0 : i32
    return %arg0, %c0_i32, %c0_i32_0 : i32, i32, i32
  }
  func.func @transform_1(%arg0: i32) -> (i32, i32, i32) {
    %c0_i32 = arith.constant 0 : i32
    %c0_i32_0 = arith.constant 0 : i32
    %c0_i32_1 = arith.constant 0 : i32
    %c0_i32_2 = arith.constant 0 : i32
    return %c0_i32, %c0_i32_0, %c0_i32_1 : i32, i32, i32
  }
  func.func @transform_2(%arg0: i32) -> (i32, i32) {
    %c0_i32 = arith.constant 0 : i32
    %c0_i32_0 = arith.constant 0 : i32
    %c0_i32_1 = arith.constant 0 : i32
    return %c0_i32, %c0_i32_0 : i32, i32
  }
  func.func @transform_3(%arg0: i32) -> (i32, i32, i32) {
    %c0_i32 = arith.constant 0 : i32
    %c0_i32_0 = arith.constant 0 : i32
    %c0_i32_1 = arith.constant 0 : i32
    %c0_i32_2 = arith.constant 0 : i32
    return %c0_i32, %c0_i32_0, %c0_i32_1 : i32, i32, i32
  }
  func.func @transform_4(%arg0: i32) -> (i32, i32) {
    %c0_i32 = arith.constant 0 : i32
    %c0_i32_0 = arith.constant 0 : i32
    %c0_i32_1 = arith.constant 0 : i32
    return %c0_i32, %c0_i32_0 : i32, i32
  }
  func.func @transform_5(%arg0: i32) -> (i32, i32) {
    %c0_i32 = arith.constant 0 : i32
    %c0_i32_0 = arith.constant 0 : i32
    %c0_i32_1 = arith.constant 0 : i32
    return %c0_i32, %c0_i32_0 : i32, i32
  }
  func.func @transform_6(%arg0: i32) -> (i32, i32, i32) {
    %c0_i32 = arith.constant 0 : i32
    %c0_i32_0 = arith.constant 0 : i32
    %c0_i32_1 = arith.constant 0 : i32
    return %arg0, %c0_i32, %c0_i32_0 : i32, i32, i32
  }
}

</mosaic_0001>

<llo_original>
// kernel: tile.19
$region0: #{tile.19}
  %s0 = inlined_call_operand.vmem [shape: f32[16,8], index: 0, kind: input, shape index: {}]
  %s1 = inlined_call_operand.vmem [shape: f32[1,128], index: 1, kind: output, shape index: {}]
  $region1: #{tile.19} parent=0
    #allocation0 [shape = 'u8[4096]{0}', space=vmem, size = 0x1000, scoped, tag = 'scoped mem for output reshape']
    %v2 = vld [vmem:[%s0] sm:$0x1]
    %vm3 = vcmask 64512
    %4 = vst.msk [vmem:[#allocation0] sm:$0x1] %vm3, %v2
    %s5 = scalar_lea.vmem %s0, 15
    %v6 = vld [vmem:[%s5] sm:$0x1]
    %7 = vrot.lane.b32.xlu0 %v6, 120
    %v8 = vpop.permute.xlu0 %7
    %vm9 = vcmask 1048512
    %10 = vst.msk [vmem:[#allocation0] sm:$0x1] %vm9, %v8
    %s11 = scalar_lea.vmem %s0, 14
    %v12 = vld [vmem:[%s11] sm:$0x1]
    %13 = vrot.lane.b32.xlu0 %v12, 112
    %v14 = vpop.permute.xlu0 %13
    %vm15 = vcmask 982912
    %16 = vst.msk [vmem:[#allocation0] sm:$0x1] %vm15, %v14
    %s17 = scalar_lea.vmem %s0, 13
    %v18 = vld [vmem:[%s17] sm:$0x1]
    %19 = vrot.lane.b32.xlu0 %v18, 104
    %v20 = vpop.permute.xlu0 %19
    %vm21 = vcmask 917312
    %22 = vst.msk [vmem:[#allocation0] sm:$0x1] %vm21, %v20
    %s23 = scalar_lea.vmem %s0, 12
    %v24 = vld [vmem:[%s23] sm:$0x1]
    %25 = vrot.lane.b32.xlu0 %v24, 96
    %v26 = vpop.permute.xlu0 %25
    %vm27 = vcmask 851712
    %28 = vst.msk [vmem:[#allocation0] sm:$0x1] %vm27, %v26
    %s29 = scalar_lea.vmem %s0, 11
    %v30 = vld [vmem:[%s29] sm:$0x1]
    %31 = vrot.lane.b32.xlu0 %v30, 88
    %v32 = vpop.permute.xlu0 %31
    %vm33 = vcmask 786112
    %34 = vst.msk [vmem:[#allocation0] sm:$0x1] %vm33, %v32
    %s35 = scalar_lea.vmem %s0, 10
    %v36 = vld [vmem:[%s35] sm:$0x1]
    %37 = vrot.lane.b32.xlu0 %v36, 80
    %v38 = vpop.permute.xlu0 %37
    %vm39 = vcmask 720512
    %40 = vst.msk [vmem:[#allocation0] sm:$0x1] %vm39, %v38
    %s41 = scalar_lea.vmem %s0, 9
    %v42 = vld [vmem:[%s41] sm:$0x1]
    %43 = vrot.lane.b32.xlu0 %v42, 72
    %v44 = vpop.permute.xlu0 %43
    %vm45 = vcmask 654912
    %46 = vst.msk [vmem:[#allocation0] sm:$0x1] %vm45, %v44
    %s47 = scalar_lea.vmem %s0, 8
    %v48 = vld [vmem:[%s47] sm:$0x1]
    %49 = vrot.lane.b32.xlu0 %v48, 64
    %v50 = vpop.permute.xlu0 %49
    %vm51 = vcmask 589312
    %52 = vst.msk [vmem:[#allocation0] sm:$0x1] %vm51, %v50
    %s53 = scalar_lea.vmem %s0, 7
    %v54 = vld [vmem:[%s53] sm:$0x1]
    %55 = vrot.lane.b32.xlu0 %v54, 56
    %v56 = vpop.permute.xlu0 %55
    %vm57 = vcmask 523712
    %58 = vst.msk [vmem:[#allocation0] sm:$0x1] %vm57, %v56
    %s59 = scalar_lea.vmem %s0, 6
    %v60 = vld [vmem:[%s59] sm:$0x1]
    %61 = vrot.lane.b32.xlu0 %v60, 48
    %v62 = vpop.permute.xlu0 %61
    %vm63 = vcmask 458112
    %64 = vst.msk [vmem:[#allocation0] sm:$0x1] %vm63, %v62
    %s65 = scalar_lea.vmem %s0, 5
    %v66 = vld [vmem:[%s65] sm:$0x1]
    %67 = vrot.lane.b32.xlu0 %v66, 40
    %v68 = vpop.permute.xlu0 %67
    %vm69 = vcmask 392512
    %70 = vst.msk [vmem:[#allocation0] sm:$0x1] %vm69, %v68
    %s71 = scalar_lea.vmem %s0, 4
    %v72 = vld [vmem:[%s71] sm:$0x1]
    %73 = vrot.lane.b32.xlu0 %v72, 32
    %v74 = vpop.permute.xlu0 %73
    %vm75 = vcmask 326912
    %76 = vst.msk [vmem:[#allocation0] sm:$0x1] %vm75, %v74
    %s77 = scalar_lea.vmem %s0, 3
    %v78 = vld [vmem:[%s77] sm:$0x1]
    %79 = vrot.lane.b32.xlu0 %v78, 24
    %v80 = vpop.permute.xlu0 %79
    %vm81 = vcmask 261312
    %82 = vst.msk [vmem:[#allocation0] sm:$0x1] %vm81, %v80
    %s83 = scalar_lea.vmem %s0, 2
    %v84 = vld [vmem:[%s83] sm:$0x1]
    %85 = vrot.lane.b32.xlu0 %v84, 16
    %v86 = vpop.permute.xlu0 %85
    %vm87 = vcmask 195712
    %88 = vst.msk [vmem:[#allocation0] sm:$0x1] %vm87, %v86
    %s89 = scalar_lea.vmem %s0, 1
    %v90 = vld [vmem:[%s89] sm:$0x1]
    %91 = vrot.lane.b32.xlu0 %v90, 8
    %v92 = vpop.permute.xlu0 %91
    %vm93 = vcmask 130112
    %94 = vst.msk [vmem:[#allocation0] sm:$0x1] %vm93, %v92
    %s96 = sshll.u32 1, 1
    %s97 = ssub.s32 %s96, 1
    %v99 = vld [vmem:[#allocation0] sm:%s97]
    %s100 = sshll.u32 1, 1
    %s101 = ssub.s32 %s100, 1
    %102 = vst [vmem:[%s1] sm:%s101] %v99

// kernel: tile.18
$region0: #{tile.18}
  #allocation0 [shape = 's32[1]{0}', space=sflag, size = 0x4, scoped, tag = 'scoped memory for tile.18']
  %s0 = inlined_call_operand.vmem [shape: f32[8], index: 0, kind: input, shape index: {}]
  %s1 = inlined_call_operand.vmem [shape: f32[16,8], index: 1, kind: output, shape index: {}]
  // Predicated region
  $region2: #{tile.18} parent=0 // pred_check
    _
  $region3: #{tile.18} parent=0 // pred_check_branch
    %3 = sbr.rel (0) target = $region5
  $region4: #{tile.18} parent=0 // pred_region
    _
  $region5: #{tile.18} parent=0 // pred_fallthru
    _
  %v4 = vld [vmem:[%s0] ss:$0 sm:$0xff]
  %5 = vst [vmem:[%s1] sm:$0xff] %v4
  %s6 = scalar_lea.vmem %s1, 8
  %7 = vst [vmem:[%s6] sm:$0xff] %v4

// kernel: residual_block_pallas.1
$region0: #{residual_block_pallas.1}
  #allocation0 [shape = 'u32[]', space=smem, size = 0x4, offset = 0x4, fixed_abs, tag = 'smem constant byte address 0x4 - core index']
  #allocation1 [shape = 'u32[144,128]{1,0:T(1,128)}', space=vmem, size = 0x12000, scoped, tag = 'internal scratch']
  #allocation2 [shape = 'bf16[18,64]{1,0:T(8,128)(2,1)}', space=vmem, size = 0x1800, scoped, tag = 'scratch operand']
  #allocation3 [shape = 'bf16[18,128]{1,0:T(8,128)(2,1)}', space=vmem, size = 0x1800, scoped, tag = 'scratch operand']
  %s0 = inlined_call_operand.vmem [shape: f32[2,16,64], index: 0, kind: input, shape index: {}]
  %s1 = inlined_call_operand.vmem [shape: bf16[3,64,128], index: 1, kind: input, shape index: {}]
  %s2 = inlined_call_operand.vmem [shape: f32[1,128], index: 2, kind: input, shape index: {}]
  %s3 = inlined_call_operand.vmem [shape: bf16[3,128,128], index: 3, kind: input, shape index: {}]
  %s4 = inlined_call_operand.vmem [shape: f32[1,128], index: 4, kind: input, shape index: {}]
  %s5 = inlined_call_operand.vmem [shape: bf16[64,128], index: 5, kind: input, shape index: {}]
  %s6 = inlined_call_operand.vmem [shape: f32[2,16,128], index: 6, kind: output, shape index: {}]
  %s7 = sld [smem:[#allocation0]]
  $region57: #{residual_block_pallas.1} parent=0
    _
  %s9 = ssub.s32 1, %s7
  %s10 = scalar_select 0, %s9, %s7
  loop: start=0, step=1, limit=4
  $region2: #{residual_block_pallas.1} parent=0 // loop_pre_header
    _
  $region3: #{residual_block_pallas.1} parent=0 // loop_header
    %s12 = sphi 0, %s16
    %p13 = scmp.ge.s32.totalorder %s12, 4
    %s22 = sphi 0, %s24
    %s25 = sphi 0, %s22
    %s26 = sphi 0, %s25
    %s42 = sphi 0, %s26
    %s46 = sphi 0, %s46
    %s48 = sphi 0, %s46
    %s49 = sphi 0, %s48
    %s63 = sphi 0, %s49
    %s67 = sphi 0, %s67
    %s69 = sphi 0, %s67
    %s70 = sphi 0, %s69
    %s84 = sphi 0, %s70
    %s88 = sphi 0, %s88
    %s90 = sphi 0, %s88
    %s91 = sphi 0, %s90
    %s105 = sphi 0, %s91
    %s109 = sphi 0, %s109
    %s111 = sphi 0, %s109
    %s112 = sphi 0, %s111
    %s126 = sphi 0, %s112
    %s130 = sphi 0, %s130
    %s132 = sphi 0, %s130
    %s133 = sphi 0, %s132
    %s147 = sphi 0, %s133
    %s153 = sphi 0, %s155
    %s156 = sphi 0, %s153
    %s157 = sphi 0, %s156
    %s173 = sphi 0, %s157
  $region4: #{residual_block_pallas.1} parent=0 // loop_header_branch
    %15 = sbr.rel (%p13) target = $region8
  $region5: #{residual_block_pallas.1} parent=0 // loop_body
    %s17 = ssub.s32 %s12, 1
    %s18 = ssub.s32 %s12, 2
    %s19 = sadd.s32 %s12, 1
    %s20 = ssub.s32 %s12, %s19
    %p21 = scmp.eq.s32.totalorder %s20, 0
    %s23 = sadd.s32 %s22, 1
    %s24 = scalar_select %p21, %s22, %s23
    %p27 = pneg %p21
    %p28 = scmp.eq.s32.totalorder %s12, 1
    %p29 = por %p27, %p28
    %p30 = scmp.ne.s32.totalorder %s22, %s25
    %p31 = scmp.eq.s32.totalorder %s12, 0
    %p32 = por %p30, %p31
    %p33 = scmp.ne.s32.totalorder %s22, %s25
    %p34 = scmp.eq.s32.totalorder %s17, 1
    %p35 = por %p33, %p34
    %p36 = scmp.ne.s32.totalorder %s25, %s26
    %p37 = scmp.eq.s32.totalorder %s17, 0
    %p38 = por %p36, %p37
    %p39 = scmp.ne.s32.totalorder %s25, %s26
    %p40 = scmp.eq.s32.totalorder %s18, 1
    %p41 = por %p39, %p40
    %p43 = scmp.ne.s32.totalorder %s26, %s42
    %p44 = scmp.eq.s32.totalorder %s18, 0
    %p45 = por %p43, %p44
    %s47 = sadd.s32 %s46, 1
    %p50 = scmp.eq.s32.totalorder %s12, 1
    %p51 = scmp.ne.s32.totalorder %s46, %s48
    %p52 = scmp.eq.s32.totalorder %s12, 0
    %p53 = por %p51, %p52
    %p54 = scmp.ne.s32.totalorder %s46, %s48
    %p55 = scmp.eq.s32.totalorder %s17, 1
    %p56 = por %p54, %p55
    %p57 = scmp.ne.s32.totalorder %s48, %s49
    %p58 = scmp.eq.s32.totalorder %s17, 0
    %p59 = por %p57, %p58
    %p60 = scmp.ne.s32.totalorder %s48, %s49
    %p61 = scmp.eq.s32.totalorder %s18, 1
    %p62 = por %p60, %p61
    %p64 = scmp.ne.s32.totalorder %s49, %s63
    %p65 = scmp.eq.s32.totalorder %s18, 0
    %p66 = por %p64, %p65
    %s68 = sadd.s32 %s67, 1
    %p71 = scmp.eq.s32.totalorder %s12, 1
    %p72 = scmp.ne.s32.totalorder %s67, %s69
    %p73 = scmp.eq.s32.totalorder %s12, 0
    %p74 = por %p72, %p73
    %p75 = scmp.ne.s32.totalorder %s67, %s69
    %p76 = scmp.eq.s32.totalorder %s17, 1
    %p77 = por %p75, %p76
    %p78 = scmp.ne.s32.totalorder %s69, %s70
    %p79 = scmp.eq.s32.totalorder %s17, 0
    %p80 = por %p78, %p79
    %p81 = scmp.ne.s32.totalorder %s69, %s70
    %p82 = scmp.eq.s32.totalorder %s18, 1
    %p83 = por %p81, %p82
    %p85 = scmp.ne.s32.totalorder %s70, %s84
    %p86 = scmp.eq.s32.totalorder %s18, 0
    %p87 = por %p85, %p86
    %s89 = sadd.s32 %s88, 1
    %p92 = scmp.eq.s32.totalorder %s12, 1
    %p93 = scmp.ne.s32.totalorder %s88, %s90
    %p94 = scmp.eq.s32.totalorder %s12, 0
    %p95 = por %p93, %p94
    %p96 = scmp.ne.s32.totalorder %s88, %s90
    %p97 = scmp.eq.s32.totalorder %s17, 1
    %p98 = por %p96, %p97
    %p99 = scmp.ne.s32.totalorder %s90, %s91
    %p100 = scmp.eq.s32.totalorder %s17, 0
    %p101 = por %p99, %p100
    %p102 = scmp.ne.s32.totalorder %s90, %s91
    %p103 = scmp.eq.s32.totalorder %s18, 1
    %p104 = por %p102, %p103
    %p106 = scmp.ne.s32.totalorder %s91, %s105
    %p107 = scmp.eq.s32.totalorder %s18, 0
    %p108 = por %p106, %p107
    %s110 = sadd.s32 %s109, 1
    %p113 = scmp.eq.s32.totalorder %s12, 1
    %p114 = scmp.ne.s32.totalorder %s109, %s111
    %p115 = scmp.eq.s32.totalorder %s12, 0
    %p116 = por %p114, %p115
    %p117 = scmp.ne.s32.totalorder %s109, %s111
    %p118 = scmp.eq.s32.totalorder %s17, 1
    %p119 = por %p117, %p118
    %p120 = scmp.ne.s32.totalorder %s111, %s112
    %p121 = scmp.eq.s32.totalorder %s17, 0
    %p122 = por %p120, %p121
    %p123 = scmp.ne.s32.totalorder %s111, %s112
    %p124 = scmp.eq.s32.totalorder %s18, 1
    %p125 = por %p123, %p124
    %p127 = scmp.ne.s32.totalorder %s112, %s126
    %p128 = scmp.eq.s32.totalorder %s18, 0
    %p129 = por %p127, %p128
    %s131 = sadd.s32 %s130, 1
    %p134 = scmp.eq.s32.totalorder %s12, 1
    %p135 = scmp.ne.s32.totalorder %s130, %s132
    %p136 = scmp.eq.s32.totalorder %s12, 0
    %p137 = por %p135, %p136
    %p138 = scmp.ne.s32.totalorder %s130, %s132
    %p139 = scmp.eq.s32.totalorder %s17, 1
    %p140 = por %p138, %p139
    %p141 = scmp.ne.s32.totalorder %s132, %s133
    %p142 = scmp.eq.s32.totalorder %s17, 0
    %p143 = por %p141, %p142
    %p144 = scmp.ne.s32.totalorder %s132, %s133
    %p145 = scmp.eq.s32.totalorder %s18, 1
    %p146 = por %p144, %p145
    %p148 = scmp.ne.s32.totalorder %s133, %s147
    %p149 = scmp.eq.s32.totalorder %s18, 0
    %p150 = por %p148, %p149
    %s151 = ssub.s32 %s12, %s19
    %p152 = scmp.eq.s32.totalorder %s151, 0
    %s154 = sadd.s32 %s153, 1
    %s155 = scalar_select %p152, %s153, %s154
    %p158 = pneg %p152
    %p159 = scmp.eq.s32.totalorder %s12, 1
    %p160 = por %p158, %p159
    %p161 = scmp.ne.s32.totalorder %s153, %s156
    %p162 = scmp.eq.s32.totalorder %s12, 0
    %p163 = por %p161, %p162
    %p164 = scmp.ne.s32.totalorder %s153, %s156
    %p165 = scmp.eq.s32.totalorder %s17, 1
    %p166 = por %p164, %p165
    %p167 = scmp.ne.s32.totalorder %s156, %s157
    %p168 = scmp.eq.s32.totalorder %s17, 0
    %p169 = por %p167, %p168
    %p170 = scmp.ne.s32.totalorder %s156, %s157
    %p171 = scmp.eq.s32.totalorder %s18, 1
    %p172 = por %p170, %p171
    %p174 = scmp.ne.s32.totalorder %s157, %s173
    %p175 = scmp.eq.s32.totalorder %s18, 0
    %p176 = por %p174, %p175
    %p177 = scmp.le.s32.totalorder 1, %s12
    %p178 = scmp.lt.s32.totalorder %s12, 3
    %p179 = pnand %p177, %p178
    %p180 = pneg %p179
    // Predicated region
    $region9: #{residual_block_pallas.1} parent=5 // pred_check
      _
    $region10: #{residual_block_pallas.1} parent=5 // pred_check_branch
      %182 = sbr.rel (%p179) target = $region12
    $region11: #{residual_block_pallas.1} parent=5 // pred_region
      %s183 = ssub.s32 %s12, 1
      // Predicated region
      $region13: #{residual_block_pallas.1} parent=11 // pred_check
        %p184 = pneg %p59
      $region14: #{residual_block_pallas.1} parent=11 // pred_check_branch
        %186 = sbr.rel (%p184) target = $region16
      $region15: #{residual_block_pallas.1} parent=11 // pred_region
        _
      $region16: #{residual_block_pallas.1} parent=11 // pred_fallthru
        _
      // Predicated region
      $region17: #{residual_block_pallas.1} parent=11 // pred_check
        %p187 = pneg %p80
      $region18: #{residual_block_pallas.1} parent=11 // pred_check_branch
        %189 = sbr.rel (%p187) target = $region20
      $region19: #{residual_block_pallas.1} parent=11 // pred_region
        _
      $region20: #{residual_block_pallas.1} parent=11 // pred_fallthru
        _
      // Predicated region
      $region21: #{residual_block_pallas.1} parent=11 // pred_check
        %p190 = pneg %p101
      $region22: #{residual_block_pallas.1} parent=11 // pred_check_branch
        %192 = sbr.rel (%p190) target = $region24
      $region23: #{residual_block_pallas.1} parent=11 // pred_region
        _
      $region24: #{residual_block_pallas.1} parent=11 // pred_fallthru
        _
      // Predicated region
      $region25: #{residual_block_pallas.1} parent=11 // pred_check
        %p193 = pneg %p122
      $region26: #{residual_block_pallas.1} parent=11 // pred_check_branch
        %195 = sbr.rel (%p193) target = $region28
      $region27: #{residual_block_pallas.1} parent=11 // pred_region
        _
      $region28: #{residual_block_pallas.1} parent=11 // pred_fallthru
        _
      // Predicated region
      $region29: #{residual_block_pallas.1} parent=11 // pred_check
        %p196 = pneg %p143
      $region30: #{residual_block_pallas.1} parent=11 // pred_check_branch
        %198 = sbr.rel (%p196) target = $region32
      $region31: #{residual_block_pallas.1} parent=11 // pred_region
        _
      $region32: #{residual_block_pallas.1} parent=11 // pred_fallthru
        _
    $region12: #{residual_block_pallas.1} parent=5 // pred_fallthru
      _
    %p199 = scmp.lt.s32.totalorder %s12, 2
    // Predicated region
    $region33: #{residual_block_pallas.1} parent=5 // pred_check
      %p200 = pneg %p199
    $region34: #{residual_block_pallas.1} parent=5 // pred_check_branch
      %202 = sbr.rel (%p200) target = $region36
    $region35: #{residual_block_pallas.1} parent=5 // pred_region
      // Predicated region
      $region37: #{residual_block_pallas.1} parent=35 // pred_check
        %p203 = pneg %p32
      $region38: #{residual_block_pallas.1} parent=35 // pred_check_branch
        %205 = sbr.rel (%p203) target = $region40
      $region39: #{residual_block_pallas.1} parent=35 // pred_region
        %p206 = scmp.lt.s32.totalorder %s12, 1
        %s207 = scalar_select %p206, %s12, 1
        %s208 = smul.addr %s207, 2
        %s209 = smul.addr %s208, 8
        %s210 = scalar_lea.vmem %s0, %s209
      $region40: #{residual_block_pallas.1} parent=35 // pred_fallthru
        _
    $region36: #{residual_block_pallas.1} parent=5 // pred_fallthru
      _
    %p211 = scmp.le.s32.totalorder 1, %s12
    %p212 = scmp.lt.s32.totalorder %s12, 3
    %p213 = pnand %p211, %p212
    %p214 = pneg %p213
    // Predicated region
    $region41: #{residual_block_pallas.1} parent=5 // pred_check
      _
    $region42: #{residual_block_pallas.1} parent=5 // pred_check_branch
      %216 = sbr.rel (%p213) target = $region44
    $region43: #{residual_block_pallas.1} parent=5 // pred_region
      %s217 = ssub.s32 %s12, 1
      %p218 = scmp.lt.s32.totalorder %s17, 1
      %s219 = scalar_select %p218, %s17, 1
      %s220 = smul.addr %s219, 2
      %s221 = smul.addr %s220, 8
      %s222 = scalar_lea.vmem %s0, %s221
      %p223 = pneg %p38
      %p224 = pneg %p35
      %p225 = pneg %p59
      %p226 = pneg %p56
      %p227 = pneg %p80
      %p228 = pneg %p77
      %p229 = pneg %p101
      %p230 = pneg %p98
      %p231 = pneg %p122
      %p232 = pneg %p119
      %p233 = pneg %p143
      %p234 = pneg %p140
      %p235 = pneg %p169
      %p236 = pneg %p166
      %p237 = scmp.lt.s32.totalorder %s17, 1
      %s238 = scalar_select %p237, %s17, 1
      %s239 = smul.addr %s238, 2
      %s240 = smul.addr %s239, 8
      %s241 = scalar_lea.vmem %s6, %s240
      %p242 = scmp.lt.s32.totalorder %s17, 1
      %s243 = scalar_select %p242, %s17, 1
      %s244 = smul.addr %s243, 2
      %s245 = smul.addr %s244, 8
      %s246 = scalar_lea.vmem %s0, %s245
      %p247 = scmp.lt.s32.totalorder %s17, 1
      %s248 = scalar_select %p247, %s17, 1
      %s249 = smul.addr %s248, 2
      %s250 = smul.addr %s249, 8
      %s251 = scalar_lea.vmem %s6, %s250
      %vm253 = vcmask 516096
      %vm254 = vsmask.f32 256
      %vm255 = vmand %vm253, %vm254
      %v256 = vld [vmem:[#allocation2] sm:$0x1]
      %v257 = vsel %vm255, 0, %v256
      %258 = vst [vmem:[#allocation2] sm:$0x1] %v257
      %vm259 = vsmask.f32 7938
      %vm260 = vmand %vm253, %vm259
      %v261 = vld [vmem:[#allocation2 + $0x8] sm:$0x1]
      %v262 = vsel %vm260, 0, %v261
      %263 = vst [vmem:[#allocation2 + $0x8] sm:$0x1] %v262
      %vm264 = vcmask 1040384
      %vm265 = vmand %vm264, %vm254
      %v266 = vld [vmem:[#allocation3] sm:$0x1]
      %v267 = vsel %vm265, 0, %v266
      %268 = vst [vmem:[#allocation3] sm:$0x1] %v267
      %vm269 = vmand %vm264, %vm259
      %v270 = vld [vmem:[#allocation3 + $0x8] sm:$0x1]
      %v271 = vsel %vm269, 0, %v270
      %272 = vst [vmem:[#allocation3 + $0x8] sm:$0x1] %v271
      %v273 = vld [vmem:[%s246] sm:$0xff]
      %v274 = vld [vmem:[%s246 + $0x8] sm:$0xff]
      %v275 = vpack.c.bf16 %v274, %v273
      %v277 = vunpack.c.l.b16 %v275
      %v278 = vunpack.c.h.b16 %v275
      %v279 = vpack.c.b16 %v277, %v277
      %v280 = vpack.c.b16 %v278, %v278
      %vm281 = vsmask.f32 4368
      %vm282 = vmor %vm254, %vm281
      %v284 = vshrl.u32 %v279, 16
      %v286 = vrot.slane %v284, 7
      %v287 = vshll.u32 %v279, 16
      %v289 = vor.u32 %v286, %v287
      %v290 = vrot.slane %v286, 4
      %v292 = vshrl.u32 %v280, 16
      %v294 = vrot.slane %v292, 7
      %v295 = vshll.u32 %v280, 16
      %v297 = vor.u32 %v294, %v295
      %v298 = vsel %vm282, %v290, %v297
      %v299 = vrot.slane %v294, 4
      %vm303 = vcmask 519168
      %vm304 = vmand %vm303, %vm259
      %v305 = vld [vmem:[#allocation2] sm:$0xf]
      %v306 = vsel %vm304, %v289, %v305
      %307 = vst [vmem:[#allocation2] sm:$0xf] %v306
      %vm308 = vcmask 519168
      %309 = vst.msk [vmem:[#allocation2 + $0x4] sm:$0xf] %vm308, %v298
      %v310 = vld [vmem:[#allocation2 + $0x8] sm:$0x1]
      %v311 = vsel %vm255, %v299, %v310
      %312 = vst [vmem:[#allocation2 + $0x8] sm:$0x1] %v311
      %v313 = vld [vmem:[#allocation2] sm:$0xf]
      %v314 = vld [vmem:[#allocation2 + $0x4] sm:$0xf]
      %v315 = vld [vmem:[%s1] sm:$0xf]
      %v316 = vld [vmem:[%s1 + $0x4] sm:$0xf]
      %v317 = vld [vmem:[%s1 + $0x8] sm:$0xf]
      %v318 = vld [vmem:[%s1 + $0xc] sm:$0xf]
      %v319 = vld [vmem:[%s1 + $0x10] sm:$0xf]
      %v320 = vld [vmem:[%s1 + $0x14] sm:$0xf]
      %v321 = vld [vmem:[%s1 + $0x18] sm:$0xf]
      %v322 = vld [vmem:[%s1 + $0x1c] sm:$0xf]
      %v323 = vld [vmem:[#allocation2 + $0x8] sm:$0x1]
      %s324 = scalar_lea.vmem %s1, 32
      %v325 = vld [vmem:[%s324] sm:$0xf]
      %v326 = vld [vmem:[%s324 + $0x4] sm:$0xf]
      %v327 = vld [vmem:[%s324 + $0x8] sm:$0xf]
      %v328 = vld [vmem:[%s324 + $0xc] sm:$0xf]
      %v329 = vld [vmem:[%s324 + $0x10] sm:$0xf]
      %v330 = vld [vmem:[%s324 + $0x14] sm:$0xf]
      %v331 = vld [vmem:[%s324 + $0x18] sm:$0xf]
      %v332 = vld [vmem:[%s324 + $0x1c] sm:$0xf]
      %v336 = vunpack.c.l.b16 %v313
      %v337 = vunpack.c.l.b16 %v314
      %v338 = vunpack.c.l.b16 %v323
      %v339 = vpack.c.b16 %v337, %v336
      %v340 = vpack.c.b16 %v338, %v338
      %vm341 = vsmask.f32 7424
      %v343 = vshrl.u32 %v339, 16
      %v345 = vshll.u32 %v339, 16
      %v347 = vrot.slane %v345, 1
      %v348 = vor.u32 %v343, %v347
      %v350 = vshll.u32 %v340, 16
      %v352 = vrot.slane %v350, 1
      %v353 = vsel %vm341, %v348, %v352
      %v362 = vunpack.c.l.b16 %v325
      %v363 = vunpack.c.l.b16 %v326
      %v364 = vunpack.c.l.b16 %v327
      %v365 = vunpack.c.l.b16 %v328
      %v366 = vunpack.c.l.b16 %v329
      %v367 = vunpack.c.l.b16 %v330
      %v368 = vunpack.c.l.b16 %v331
      %v369 = vunpack.c.l.b16 %v332
      %v370 = vpack.c.b16 %v363, %v362
      %v371 = vpack.c.b16 %v365, %v364
      %v372 = vpack.c.b16 %v367, %v366
      %v373 = vpack.c.b16 %v369, %v368
      %vm378 = vcmask 523264
      %v380 = vsel %vm378, %v353, 0
      %382 = vmatprep.subr.bf16.mxu0 0
      %383 = vmatpush1.bf16.msra.mxu0 0
      %384 = vmatprep.subr.bf16.mxu0 0
      %385 = vmatpush1.bf16.msra.mxu0 0
      %386 = vmatprep.subr.bf16.mxu0 0
      %387 = vmatpush1.bf16.msra.mxu0 0
      %388 = vmatprep.subr.bf16.mxu0 0
      %389 = vmatpush1.bf16.msra.mxu0 0
      %390 = vmatprep.subr.bf16.mxu0 0
      %391 = vmatpush1.bf16.msra.mxu0 %v373
      %392 = vmatprep.subr.bf16.mxu0 0
      %393 = vmatpush1.bf16.msra.mxu0 %v372
      %394 = vmatprep.subr.bf16.mxu0 0
      %395 = vmatpush1.bf16.msra.mxu0 %v371
      %396 = vmatprep.subr.bf16.mxu0 0
      %397 = vmatpush1.bf16.msra.mxu0 %v370
      %398 = vmatprep.subr.bf16.mxu0 0
      %399 = vmatpush2.bf16.msra.mxu0 0
      %400 = vmatprep.subr.bf16.mxu0 0
      %401 = vmatpush2.bf16.msra.mxu0 0
      %402 = vmatprep.subr.bf16.mxu0 0
      %403 = vmatpush2.bf16.msra.mxu0 0
      %404 = vmatprep.subr.bf16.mxu0 0
      %405 = vmatpush2.bf16.msra.mxu0 0
      %406 = vmatprep.subr.bf16.mxu0 0
      %407 = vmatpush2.bf16.msra.mxu0 0
      %408 = vmatprep.subr.bf16.mxu0 0
      %409 = vmatpush2.bf16.msra.mxu0 0
      %410 = vmatprep.subr.bf16.mxu0 0
      %411 = vmatpush2.bf16.msra.mxu0 0
      %412 = vmatprep.subr.bf16.mxu0 0
      %413 = vmatpush2.bf16.msra.mxu0 0
      %414 = vmatprep.mubr.bf16.mxu0 0
      %415 = vmatmul.mubr.bf16.gmra.mxu0 %v380
      %v416 = vpop.f32.mrf.mxu0
      %v417 = vadd.f32 0.0, %v416
      %v418 = vpop.f32.mrf.mxu0
      %v419 = vpop.f32.mrf.mxu0
      %v420 = vadd.f32 0.0, %v419
      %v421 = vpop.f32.mrf.mxu0
      %422 = vdwg.mxu0
      %v431 = vunpack.c.l.b16 %v315
      %v432 = vunpack.c.l.b16 %v316
      %v433 = vunpack.c.l.b16 %v317
      %v434 = vunpack.c.l.b16 %v318
      %v435 = vunpack.c.l.b16 %v319
      %v436 = vunpack.c.l.b16 %v320
      %v437 = vunpack.c.l.b16 %v321
      %v438 = vunpack.c.l.b16 %v322
      %v439 = vpack.c.b16 %v432, %v431
      %v440 = vpack.c.b16 %v434, %v433
      %v441 = vpack.c.b16 %v436, %v435
      %v442 = vpack.c.b16 %v438, %v437
      %v447 = vsel %vm378, %v339, 0
      %449 = vmatprep.subr.bf16.mxu0 0
      %450 = vmatpush1.bf16.msra.mxu0 0
      %451 = vmatprep.subr.bf16.mxu0 0
      %452 = vmatpush1.bf16.msra.mxu0 0
      %453 = vmatprep.subr.bf16.mxu0 0
      %454 = vmatpush1.bf16.msra.mxu0 0
      %455 = vmatprep.subr.bf16.mxu0 0
      %456 = vmatpush1.bf16.msra.mxu0 0
      %457 = vmatprep.subr.bf16.mxu0 0
      %458 = vmatpush1.bf16.msra.mxu0 %v442
      %459 = vmatprep.subr.bf16.mxu0 0
      %460 = vmatpush1.bf16.msra.mxu0 %v441
      %461 = vmatprep.subr.bf16.mxu0 0
      %462 = vmatpush1.bf16.msra.mxu0 %v440
      %463 = vmatprep.subr.bf16.mxu0 0
      %464 = vmatpush1.bf16.msra.mxu0 %v439
      %465 = vmatprep.subr.bf16.mxu0 0
      %466 = vmatpush2.bf16.msra.mxu0 0
      %467 = vmatprep.subr.bf16.mxu0 0
      %468 = vmatpush2.bf16.msra.mxu0 0
      %469 = vmatprep.subr.bf16.mxu0 0
      %470 = vmatpush2.bf16.msra.mxu0 0
      %471 = vmatprep.subr.bf16.mxu0 0
      %472 = vmatpush2.bf16.msra.mxu0 0
      %473 = vmatprep.subr.bf16.mxu0 0
      %474 = vmatpush2.bf16.msra.mxu0 0
      %475 = vmatprep.subr.bf16.mxu0 0
      %476 = vmatpush2.bf16.msra.mxu0 0
      %477 = vmatprep.subr.bf16.mxu0 0
      %478 = vmatpush2.bf16.msra.mxu0 0
      %479 = vmatprep.subr.bf16.mxu0 0
      %480 = vmatpush2.bf16.msra.mxu0 0
      %481 = vmatprep.mubr.bf16.mxu0 0
      %482 = vmatmul.mubr.bf16.gmra.mxu0 %v447
      %v483 = vpop.f32.mrf.mxu0
      %v484 = vadd.f32 %v417, %v483
      %v485 = vpop.f32.mrf.mxu0
      %v486 = vpop.f32.mrf.mxu0
      %v487 = vadd.f32 %v420, %v486
      %v488 = vpop.f32.mrf.mxu0
      %489 = vdwg.mxu0
      %v490 = vld [vmem:[#allocation2] sm:$0xe]
      %s491 = scalar_lea.vmem %s1, 64
      %v492 = vld [vmem:[%s491] sm:$0xf]
      %v493 = vld [vmem:[%s491 + $0x4] sm:$0xf]
      %v494 = vld [vmem:[%s491 + $0x8] sm:$0xf]
      %v495 = vld [vmem:[%s491 + $0xc] sm:$0xf]
      %v496 = vld [vmem:[%s491 + $0x10] sm:$0xf]
      %v497 = vld [vmem:[%s491 + $0x14] sm:$0xf]
      %v498 = vld [vmem:[%s491 + $0x18] sm:$0xf]
      %v499 = vld [vmem:[%s491 + $0x1c] sm:$0xf]
      %v501 = vunpack.c.l.b16 %v490
      %v502 = vpack.c.b16 %v337, %v501
      %vm503 = vcmask 1046528
      %v504 = vrot.slane %v502, 1
      %v505 = vrot.slane %v340, 1
      %v506 = vsel %vm503, %v504, %v505
      %v515 = vunpack.c.l.b16 %v492
      %v516 = vunpack.c.l.b16 %v493
      %v517 = vunpack.c.l.b16 %v494
      %v518 = vunpack.c.l.b16 %v495
      %v519 = vunpack.c.l.b16 %v496
      %v520 = vunpack.c.l.b16 %v497
      %v521 = vunpack.c.l.b16 %v498
      %v522 = vunpack.c.l.b16 %v499
      %v523 = vpack.c.b16 %v516, %v515
      %v524 = vpack.c.b16 %v518, %v517
      %v525 = vpack.c.b16 %v520, %v519
      %v526 = vpack.c.b16 %v522, %v521
      %v532 = vsel %vm378, %v506, 0
      %534 = vmatprep.subr.bf16.mxu0 0
      %535 = vmatpush1.bf16.msra.mxu0 0
      %536 = vmatprep.subr.bf16.mxu0 0
      %537 = vmatpush1.bf16.msra.mxu0 0
      %538 = vmatprep.subr.bf16.mxu0 0
      %539 = vmatpush1.bf16.msra.mxu0 0
      %540 = vmatprep.subr.bf16.mxu0 0
      %541 = vmatpush1.bf16.msra.mxu0 0
      %542 = vmatprep.subr.bf16.mxu0 0
      %543 = vmatpush1.bf16.msra.mxu0 %v526
      %544 = vmatprep.subr.bf16.mxu0 0
      %545 = vmatpush1.bf16.msra.mxu0 %v525
      %546 = vmatprep.subr.bf16.mxu0 0
      %547 = vmatpush1.bf16.msra.mxu0 %v524
      %548 = vmatprep.subr.bf16.mxu0 0
      %549 = vmatpush1.bf16.msra.mxu0 %v523
      %550 = vmatprep.subr.bf16.mxu0 0
      %551 = vmatpush2.bf16.msra.mxu0 0
      %552 = vmatprep.subr.bf16.mxu0 0
      %553 = vmatpush2.bf16.msra.mxu0 0
      %554 = vmatprep.subr.bf16.mxu0 0
      %555 = vmatpush2.bf16.msra.mxu0 0
      %556 = vmatprep.subr.bf16.mxu0 0
      %557 = vmatpush2.bf16.msra.mxu0 0
      %558 = vmatprep.subr.bf16.mxu0 0
      %559 = vmatpush2.bf16.msra.mxu0 0
      %560 = vmatprep.subr.bf16.mxu0 0
      %561 = vmatpush2.bf16.msra.mxu0 0
      %562 = vmatprep.subr.bf16.mxu0 0
      %563 = vmatpush2.bf16.msra.mxu0 0
      %564 = vmatprep.subr.bf16.mxu0 0
      %565 = vmatpush2.bf16.msra.mxu0 0
      %566 = vmatprep.mubr.bf16.mxu0 0
      %567 = vmatmul.mubr.bf16.gmra.mxu0 %v532
      %v568 = vpop.f32.mrf.mxu0
      %v569 = vadd.f32 0.0, %v568
      %v570 = vpop.f32.mrf.mxu0
      %v571 = vpop.f32.mrf.mxu0
      %v572 = vadd.f32 0.0, %v571
      %v573 = vpop.f32.mrf.mxu0
      %574 = vdwg.mxu0
      %v575 = vadd.f32 %v484, %v569
      %v576 = vadd.f32 %v487, %v572
      %v577 = vld [vmem:[%s2] sm:$0x1]
      %v579 = vlaneseq
      %v580 = vshrl.u32 %v579, 7
      %v581 = vsub.s32 0, %v580
      %v582 = vrot.slane %v577, %v581
      %v584 = vadd.f32 %v575, %v582
      %v585 = vadd.f32 %v576, %v582
      %v586 = vmax.f32 %v584, 0.0
      %v587 = vmax.f32 %v585, 0.0
      %v588 = vpack.c.bf16 %v587, %v586
      %v590 = vunpack.c.l.b16 %v588
      %v591 = vunpack.c.h.b16 %v588
      %v592 = vpack.c.b16 %v590, %v590
      %v593 = vpack.c.b16 %v591, %v591
      %v595 = vshrl.u32 %v592, 16
      %v597 = vrot.slane %v595, 7
      %v598 = vshll.u32 %v592, 16
      %v600 = vor.u32 %v597, %v598
      %v601 = vrot.slane %v597, 4
      %v603 = vshrl.u32 %v593, 16
      %v605 = vrot.slane %v603, 7
      %v606 = vshll.u32 %v593, 16
      %v608 = vor.u32 %v605, %v606
      %v609 = vsel %vm282, %v601, %v608
      %v610 = vrot.slane %v605, 4
      %vm614 = vcmask 1043456
      %vm615 = vmand %vm614, %vm259
      %v616 = vld [vmem:[#allocation3] sm:$0xf]
      %v617 = vsel %vm615, %v600, %v616
      %618 = vst [vmem:[#allocation3] sm:$0xf] %v617
      %619 = vst [vmem:[#allocation3 + $0x4] sm:$0xf] %v609
      %v620 = vld [vmem:[#allocation3 + $0x8] sm:$0x1]
      %v621 = vsel %vm265, %v610, %v620
      %622 = vst [vmem:[#allocation3 + $0x8] sm:$0x1] %v621
      %v623 = vld [vmem:[#allocation2] sm:$0xf]
      %v624 = vld [vmem:[#allocation2 + $0x4] sm:$0xf]
      %v625 = vld [vmem:[#allocation2 + $0x8] sm:$0x1]
      %v626 = vld [vmem:[%s5] sm:$0xf]
      %v627 = vld [vmem:[%s5 + $0x4] sm:$0xf]
      %v628 = vld [vmem:[%s5 + $0x8] sm:$0xf]
      %v629 = vld [vmem:[%s5 + $0xc] sm:$0xf]
      %v630 = vld [vmem:[%s5 + $0x10] sm:$0xf]
      %v631 = vld [vmem:[%s5 + $0x14] sm:$0xf]
      %v632 = vld [vmem:[%s5 + $0x18] sm:$0xf]
      %v633 = vld [vmem:[%s5 + $0x1c] sm:$0xf]
      %v634 = vld [vmem:[%s4] sm:$0x1]
      %v636 = vlaneseq
      %v637 = vshrl.u32 %v636, 7
      %v638 = vsub.s32 0, %v637
      %v639 = vrot.slane %v634, %v638
      %v644 = vunpack.c.l.b16 %v623
      %v645 = vunpack.c.l.b16 %v624
      %v646 = vunpack.c.l.b16 %v625
      %v647 = vpack.c.b16 %v645, %v644
      %v648 = vpack.c.b16 %v646, %v646
      %v650 = vshrl.u32 %v647, 16
      %v652 = vshll.u32 %v647, 16
      %v654 = vrot.slane %v652, 1
      %v655 = vor.u32 %v650, %v654
      %v657 = vshll.u32 %v648, 16
      %v659 = vrot.slane %v657, 1
      %v660 = vsel %vm341, %v655, %v659
      %v669 = vunpack.c.l.b16 %v626
      %v670 = vunpack.c.l.b16 %v627
      %v671 = vunpack.c.l.b16 %v628
      %v672 = vunpack.c.l.b16 %v629
      %v673 = vunpack.c.l.b16 %v630
      %v674 = vunpack.c.l.b16 %v631
      %v675 = vunpack.c.l.b16 %v632
      %v676 = vunpack.c.l.b16 %v633
      %v677 = vpack.c.b16 %v670, %v669
      %v678 = vpack.c.b16 %v672, %v671
      %v679 = vpack.c.b16 %v674, %v673
      %v680 = vpack.c.b16 %v676, %v675
      %v686 = vsel %vm378, %v660, 0
      %688 = vmatprep.subr.bf16.mxu0 0
      %689 = vmatpush1.bf16.msra.mxu0 0
      %690 = vmatprep.subr.bf16.mxu0 0
      %691 = vmatpush1.bf16.msra.mxu0 0
      %692 = vmatprep.subr.bf16.mxu0 0
      %693 = vmatpush1.bf16.msra.mxu0 0
      %694 = vmatprep.subr.bf16.mxu0 0
      %695 = vmatpush1.bf16.msra.mxu0 0
      %696 = vmatprep.subr.bf16.mxu0 0
      %697 = vmatpush1.bf16.msra.mxu0 %v680
      %698 = vmatprep.subr.bf16.mxu0 0
      %699 = vmatpush1.bf16.msra.mxu0 %v679
      %700 = vmatprep.subr.bf16.mxu0 0
      %701 = vmatpush1.bf16.msra.mxu0 %v678
      %702 = vmatprep.subr.bf16.mxu0 0
      %703 = vmatpush1.bf16.msra.mxu0 %v677
      %704 = vmatprep.subr.bf16.mxu0 0
      %705 = vmatpush2.bf16.msra.mxu0 0
      %706 = vmatprep.subr.bf16.mxu0 0
      %707 = vmatpush2.bf16.msra.mxu0 0
      %708 = vmatprep.subr.bf16.mxu0 0
      %709 = vmatpush2.bf16.msra.mxu0 0
      %710 = vmatprep.subr.bf16.mxu0 0
      %711 = vmatpush2.bf16.msra.mxu0 0
      %712 = vmatprep.subr.bf16.mxu0 0
      %713 = vmatpush2.bf16.msra.mxu0 0
      %714 = vmatprep.subr.bf16.mxu0 0
      %715 = vmatpush2.bf16.msra.mxu0 0
      %716 = vmatprep.subr.bf16.mxu0 0
      %717 = vmatpush2.bf16.msra.mxu0 0
      %718 = vmatprep.subr.bf16.mxu0 0
      %719 = vmatpush2.bf16.msra.mxu0 0
      %720 = vmatprep.mubr.bf16.mxu0 0
      %721 = vmatmul.mubr.bf16.gmra.mxu0 %v686
      %v722 = vpop.f32.mrf.mxu0
      %v723 = vadd.f32 %v639, %v722
      %v724 = vpop.f32.mrf.mxu0
      %v725 = vpop.f32.mrf.mxu0
      %v726 = vadd.f32 %v639, %v725
      %v727 = vpop.f32.mrf.mxu0
      %728 = vdwg.mxu0
      %v729 = vld [vmem:[#allocation3] sm:$0xf]
      %v730 = vld [vmem:[#allocation3 + $0x4] sm:$0xf]
      %v731 = vld [vmem:[%s3] sm:$0xf]
      %v732 = vld [vmem:[%s3 + $0x4] sm:$0xf]
      %v733 = vld [vmem:[%s3 + $0x8] sm:$0xf]
      %v734 = vld [vmem:[%s3 + $0xc] sm:$0xf]
      %v735 = vld [vmem:[%s3 + $0x10] sm:$0xf]
      %v736 = vld [vmem:[%s3 + $0x14] sm:$0xf]
      %v737 = vld [vmem:[%s3 + $0x18] sm:$0xf]
      %v738 = vld [vmem:[%s3 + $0x1c] sm:$0xf]
      %v739 = vld [vmem:[%s3 + $0x20] sm:$0xf]
      %v740 = vld [vmem:[%s3 + $0x24] sm:$0xf]
      %v741 = vld [vmem:[%s3 + $0x28] sm:$0xf]
      %v742 = vld [vmem:[%s3 + $0x2c] sm:$0xf]
      %v743 = vld [vmem:[%s3 + $0x30] sm:$0xf]
      %v744 = vld [vmem:[%s3 + $0x34] sm:$0xf]
      %v745 = vld [vmem:[%s3 + $0x38] sm:$0xf]
      %v746 = vld [vmem:[%s3 + $0x3c] sm:$0xf]
      %v749 = vunpack.c.l.b16 %v729
      %v750 = vunpack.c.l.b16 %v730
      %v751 = vpack.c.b16 %v750, %v749
      %v769 = vunpack.c.l.b16 %v731
      %v770 = vunpack.c.l.b16 %v732
      %v771 = vunpack.c.l.b16 %v733
      %v772 = vunpack.c.l.b16 %v734
      %v773 = vunpack.c.l.b16 %v735
      %v774 = vunpack.c.l.b16 %v736
      %v775 = vunpack.c.l.b16 %v737
      %v776 = vunpack.c.l.b16 %v738
      %v777 = vunpack.c.l.b16 %v739
      %v778 = vunpack.c.l.b16 %v740
      %v779 = vunpack.c.l.b16 %v741
      %v780 = vunpack.c.l.b16 %v742
      %v781 = vunpack.c.l.b16 %v743
      %v782 = vunpack.c.l.b16 %v744
      %v783 = vunpack.c.l.b16 %v745
      %v784 = vunpack.c.l.b16 %v746
      %v785 = vpack.c.b16 %v770, %v769
      %v786 = vpack.c.b16 %v772, %v771
      %v787 = vpack.c.b16 %v774, %v773
      %v788 = vpack.c.b16 %v776, %v775
      %v789 = vpack.c.b16 %v778, %v777
      %v790 = vpack.c.b16 %v780, %v779
      %v791 = vpack.c.b16 %v782, %v781
      %v792 = vpack.c.b16 %v784, %v783
      %801 = vmatprep.subr.bf16.mxu0 0
      %802 = vmatpush1.bf16.msra.mxu0 %v792
      %803 = vmatprep.subr.bf16.mxu0 0
      %804 = vmatpush1.bf16.msra.mxu0 %v791
      %805 = vmatprep.subr.bf16.mxu0 0
      %806 = vmatpush1.bf16.msra.mxu0 %v790
      %807 = vmatprep.subr.bf16.mxu0 0
      %808 = vmatpush1.bf16.msra.mxu0 %v789
      %809 = vmatprep.subr.bf16.mxu0 0
      %810 = vmatpush1.bf16.msra.mxu0 %v788
      %811 = vmatprep.subr.bf16.mxu0 0
      %812 = vmatpush1.bf16.msra.mxu0 %v787
      %813 = vmatprep.subr.bf16.mxu0 0
      %814 = vmatpush1.bf16.msra.mxu0 %v786
      %815 = vmatprep.subr.bf16.mxu0 0
      %816 = vmatpush1.bf16.msra.mxu0 %v785
      %817 = vmatprep.subr.bf16.mxu0 0
      %818 = vmatpush2.bf16.msra.mxu0 0
      %819 = vmatprep.subr.bf16.mxu0 0
      %820 = vmatpush2.bf16.msra.mxu0 0
      %821 = vmatprep.subr.bf16.mxu0 0
      %822 = vmatpush2.bf16.msra.mxu0 0
      %823 = vmatprep.subr.bf16.mxu0 0
      %824 = vmatpush2.bf16.msra.mxu0 0
      %825 = vmatprep.subr.bf16.mxu0 0
      %826 = vmatpush2.bf16.msra.mxu0 0
      %827 = vmatprep.subr.bf16.mxu0 0
      %828 = vmatpush2.bf16.msra.mxu0 0
      %829 = vmatprep.subr.bf16.mxu0 0
      %830 = vmatpush2.bf16.msra.mxu0 0
      %831 = vmatprep.subr.bf16.mxu0 0
      %832 = vmatpush2.bf16.msra.mxu0 0
      %833 = vmatprep.mubr.bf16.mxu0 0
      %834 = vmatmul.mubr.bf16.gmra.mxu0 %v751
      %v835 = vpop.f32.mrf.mxu0
      %v836 = vadd.f32 0.0, %v835
      %v837 = vpop.f32.mrf.mxu0
      %v838 = vpop.f32.mrf.mxu0
      %v839 = vadd.f32 0.0, %v838
      %v840 = vpop.f32.mrf.mxu0
      %841 = vdwg.mxu0
      %v842 = vadd.f32 %v723, %v836
      %v843 = vadd.f32 %v726, %v839
      %v844 = vld [vmem:[#allocation3] sm:$0xf]
      %v845 = vld [vmem:[#allocation3 + $0x4] sm:$0xf]
      %v846 = vld [vmem:[#allocation3 + $0x8] sm:$0x1]
      %s847 = scalar_lea.vmem %s3, 64
      %v848 = vld [vmem:[%s847] sm:$0xf]
      %v849 = vld [vmem:[%s847 + $0x4] sm:$0xf]
      %v850 = vld [vmem:[%s847 + $0x8] sm:$0xf]
      %v851 = vld [vmem:[%s847 + $0xc] sm:$0xf]
      %v852 = vld [vmem:[%s847 + $0x10] sm:$0xf]
      %v853 = vld [vmem:[%s847 + $0x14] sm:$0xf]
      %v854 = vld [vmem:[%s847 + $0x18] sm:$0xf]
      %v855 = vld [vmem:[%s847 + $0x1c] sm:$0xf]
      %v856 = vld [vmem:[%s847 + $0x20] sm:$0xf]
      %v857 = vld [vmem:[%s847 + $0x24] sm:$0xf]
      %v858 = vld [vmem:[%s847 + $0x28] sm:$0xf]
      %v859 = vld [vmem:[%s847 + $0x2c] sm:$0xf]
      %v860 = vld [vmem:[%s847 + $0x30] sm:$0xf]
      %v861 = vld [vmem:[%s847 + $0x34] sm:$0xf]
      %v862 = vld [vmem:[%s847 + $0x38] sm:$0xf]
      %v863 = vld [vmem:[%s847 + $0x3c] sm:$0xf]
      %v867 = vunpack.c.l.b16 %v844
      %v868 = vunpack.c.l.b16 %v845
      %v869 = vunpack.c.l.b16 %v846
      %v870 = vpack.c.b16 %v868, %v867
      %v871 = vpack.c.b16 %v869, %v869
      %v873 = vshrl.u32 %v870, 16
      %v875 = vshll.u32 %v870, 16
      %v877 = vrot.slane %v875, 1
      %v878 = vor.u32 %v873, %v877
      %v880 = vshll.u32 %v871, 16
      %v882 = vrot.slane %v880, 1
      %v883 = vsel %vm341, %v878, %v882
      %v901 = vunpack.c.l.b16 %v848
      %v902 = vunpack.c.l.b16 %v849
      %v903 = vunpack.c.l.b16 %v850
      %v904 = vunpack.c.l.b16 %v851
      %v905 = vunpack.c.l.b16 %v852
      %v906 = vunpack.c.l.b16 %v853
      %v907 = vunpack.c.l.b16 %v854
      %v908 = vunpack.c.l.b16 %v855
      %v909 = vunpack.c.l.b16 %v856
      %v910 = vunpack.c.l.b16 %v857
      %v911 = vunpack.c.l.b16 %v858
      %v912 = vunpack.c.l.b16 %v859
      %v913 = vunpack.c.l.b16 %v860
      %v914 = vunpack.c.l.b16 %v861
      %v915 = vunpack.c.l.b16 %v862
      %v916 = vunpack.c.l.b16 %v863
      %v917 = vpack.c.b16 %v902, %v901
      %v918 = vpack.c.b16 %v904, %v903
      %v919 = vpack.c.b16 %v906, %v905
      %v920 = vpack.c.b16 %v908, %v907
      %v921 = vpack.c.b16 %v910, %v909
      %v922 = vpack.c.b16 %v912, %v911
      %v923 = vpack.c.b16 %v914, %v913
      %v924 = vpack.c.b16 %v916, %v915
      %933 = vmatprep.subr.bf16.mxu0 0
      %934 = vmatpush1.bf16.msra.mxu0 %v924
      %935 = vmatprep.subr.bf16.mxu0 0
      %936 = vmatpush1.bf16.msra.mxu0 %v923
      %937 = vmatprep.subr.bf16.mxu0 0
      %938 = vmatpush1.bf16.msra.mxu0 %v922
      %939 = vmatprep.subr.bf16.mxu0 0
      %940 = vmatpush1.bf16.msra.mxu0 %v921
      %941 = vmatprep.subr.bf16.mxu0 0
      %942 = vmatpush1.bf16.msra.mxu0 %v920
      %943 = vmatprep.subr.bf16.mxu0 0
      %944 = vmatpush1.bf16.msra.mxu0 %v919
      %945 = vmatprep.subr.bf16.mxu0 0
      %946 = vmatpush1.bf16.msra.mxu0 %v918
      %947 = vmatprep.subr.bf16.mxu0 0
      %948 = vmatpush1.bf16.msra.mxu0 %v917
      %949 = vmatprep.subr.bf16.mxu0 0
      %950 = vmatpush2.bf16.msra.mxu0 0
      %951 = vmatprep.subr.bf16.mxu0 0
      %952 = vmatpush2.bf16.msra.mxu0 0
      %953 = vmatprep.subr.bf16.mxu0 0
      %954 = vmatpush2.bf16.msra.mxu0 0
      %955 = vmatprep.subr.bf16.mxu0 0
      %956 = vmatpush2.bf16.msra.mxu0 0
      %957 = vmatprep.subr.bf16.mxu0 0
      %958 = vmatpush2.bf16.msra.mxu0 0
      %959 = vmatprep.subr.bf16.mxu0 0
      %960 = vmatpush2.bf16.msra.mxu0 0
      %961 = vmatprep.subr.bf16.mxu0 0
      %962 = vmatpush2.bf16.msra.mxu0 0
      %963 = vmatprep.subr.bf16.mxu0 0
      %964 = vmatpush2.bf16.msra.mxu0 0
      %965 = vmatprep.mubr.bf16.mxu0 0
      %966 = vmatmul.mubr.bf16.gmra.mxu0 %v883
      %v967 = vpop.f32.mrf.mxu0
      %v968 = vadd.f32 0.0, %v967
      %v969 = vpop.f32.mrf.mxu0
      %v970 = vpop.f32.mrf.mxu0
      %v971 = vadd.f32 0.0, %v970
      %v972 = vpop.f32.mrf.mxu0
      %973 = vdwg.mxu0
      %v974 = vadd.f32 %v842, %v968
      %v975 = vadd.f32 %v843, %v971
      %v976 = vld [vmem:[#allocation3] sm:$0xe]
      %s977 = scalar_lea.vmem %s3, 128
      %v978 = vld [vmem:[%s977] sm:$0xf]
      %v979 = vld [vmem:[%s977 + $0x4] sm:$0xf]
      %v980 = vld [vmem:[%s977 + $0x8] sm:$0xf]
      %v981 = vld [vmem:[%s977 + $0xc] sm:$0xf]
      %v982 = vld [vmem:[%s977 + $0x10] sm:$0xf]
      %v983 = vld [vmem:[%s977 + $0x14] sm:$0xf]
      %v984 = vld [vmem:[%s977 + $0x18] sm:$0xf]
      %v985 = vld [vmem:[%s977 + $0x1c] sm:$0xf]
      %v986 = vld [vmem:[%s977 + $0x20] sm:$0xf]
      %v987 = vld [vmem:[%s977 + $0x24] sm:$0xf]
      %v988 = vld [vmem:[%s977 + $0x28] sm:$0xf]
      %v989 = vld [vmem:[%s977 + $0x2c] sm:$0xf]
      %v990 = vld [vmem:[%s977 + $0x30] sm:$0xf]
      %v991 = vld [vmem:[%s977 + $0x34] sm:$0xf]
      %v992 = vld [vmem:[%s977 + $0x38] sm:$0xf]
      %v993 = vld [vmem:[%s977 + $0x3c] sm:$0xf]
      %v995 = vunpack.c.l.b16 %v976
      %v996 = vpack.c.b16 %v868, %v995
      %v997 = vrot.slane %v996, 1
      %v998 = vrot.slane %v871, 1
      %v999 = vsel %vm503, %v997, %v998
      %v1017 = vunpack.c.l.b16 %v978
      %v1018 = vunpack.c.l.b16 %v979
      %v1019 = vunpack.c.l.b16 %v980
      %v1020 = vunpack.c.l.b16 %v981
      %v1021 = vunpack.c.l.b16 %v982
      %v1022 = vunpack.c.l.b16 %v983
      %v1023 = vunpack.c.l.b16 %v984
      %v1024 = vunpack.c.l.b16 %v985
      %v1025 = vunpack.c.l.b16 %v986
      %v1026 = vunpack.c.l.b16 %v987
      %v1027 = vunpack.c.l.b16 %v988
      %v1028 = vunpack.c.l.b16 %v989
      %v1029 = vunpack.c.l.b16 %v990
      %v1030 = vunpack.c.l.b16 %v991
      %v1031 = vunpack.c.l.b16 %v992
      %v1032 = vunpack.c.l.b16 %v993
      %v1033 = vpack.c.b16 %v1018, %v1017
      %v1034 = vpack.c.b16 %v1020, %v1019
      %v1035 = vpack.c.b16 %v1022, %v1021
      %v1036 = vpack.c.b16 %v1024, %v1023
      %v1037 = vpack.c.b16 %v1026, %v1025
      %v1038 = vpack.c.b16 %v1028, %v1027
      %v1039 = vpack.c.b16 %v1030, %v1029
      %v1040 = vpack.c.b16 %v1032, %v1031
      %1049 = vmatprep.subr.bf16.mxu0 0
      %1050 = vmatpush1.bf16.msra.mxu0 %v1040
      %1051 = vmatprep.subr.bf16.mxu0 0
      %1052 = vmatpush1.bf16.msra.mxu0 %v1039
      %1053 = vmatprep.subr.bf16.mxu0 0
      %1054 = vmatpush1.bf16.msra.mxu0 %v1038
      %1055 = vmatprep.subr.bf16.mxu0 0
      %1056 = vmatpush1.bf16.msra.mxu0 %v1037
      %1057 = vmatprep.subr.bf16.mxu0 0
      %1058 = vmatpush1.bf16.msra.mxu0 %v1036
      %1059 = vmatprep.subr.bf16.mxu0 0
      %1060 = vmatpush1.bf16.msra.mxu0 %v1035
      %1061 = vmatprep.subr.bf16.mxu0 0
      %1062 = vmatpush1.bf16.msra.mxu0 %v1034
      %1063 = vmatprep.subr.bf16.mxu0 0
      %1064 = vmatpush1.bf16.msra.mxu0 %v1033
      %1065 = vmatprep.subr.bf16.mxu0 0
      %1066 = vmatpush2.bf16.msra.mxu0 0
      %1067 = vmatprep.subr.bf16.mxu0 0
      %1068 = vmatpush2.bf16.msra.mxu0 0
      %1069 = vmatprep.subr.bf16.mxu0 0
      %1070 = vmatpush2.bf16.msra.mxu0 0
      %1071 = vmatprep.subr.bf16.mxu0 0
      %1072 = vmatpush2.bf16.msra.mxu0 0
      %1073 = vmatprep.subr.bf16.mxu0 0
      %1074 = vmatpush2.bf16.msra.mxu0 0
      %1075 = vmatprep.subr.bf16.mxu0 0
      %1076 = vmatpush2.bf16.msra.mxu0 0
      %1077 = vmatprep.subr.bf16.mxu0 0
      %1078 = vmatpush2.bf16.msra.mxu0 0
      %1079 = vmatprep.subr.bf16.mxu0 0
      %1080 = vmatpush2.bf16.msra.mxu0 0
      %1081 = vmatprep.mubr.bf16.mxu0 0
      %1082 = vmatmul.mubr.bf16.gmra.mxu0 %v999
      %v1083 = vpop.f32.mrf.mxu0
      %v1084 = vadd.f32 0.0, %v1083
      %v1085 = vpop.f32.mrf.mxu0
      %v1086 = vpop.f32.mrf.mxu0
      %v1087 = vadd.f32 0.0, %v1086
      %v1088 = vpop.f32.mrf.mxu0
      %1089 = vdwg.mxu0
      %v1090 = vadd.f32 %v974, %v1084
      %v1091 = vadd.f32 %v975, %v1087
      %v1092 = vmax.f32 %v1090, 0.0
      %v1093 = vmax.f32 %v1091, 0.0
      %1094 = vst [vmem:[%s251] sm:$0xff] %v1092
      %1095 = vst [vmem:[%s251 + $0x8] sm:$0xff] %v1093
      %p1096 = scmp.lt.s32.totalorder %s17, 1
      %s1097 = scalar_select %p1096, %s17, 1
      %s1098 = smul.addr %s1097, 2
      %s1099 = smul.addr %s1098, 8
      %s1100 = scalar_lea.vmem %s6, %s1099
      // Predicated region
      $region45: #{residual_block_pallas.1} parent=43 // pred_check
        %p1101 = pneg %p166
      $region46: #{residual_block_pallas.1} parent=43 // pred_check_branch
        %1103 = sbr.rel (%p1101) target = $region48
      $region47: #{residual_block_pallas.1} parent=43 // pred_region
        _
      $region48: #{residual_block_pallas.1} parent=43 // pred_fallthru
        _
    $region44: #{residual_block_pallas.1} parent=5 // pred_fallthru
      _
    %p1104 = scmp.le.s32.totalorder 2, %s12
    // Predicated region
    $region49: #{residual_block_pallas.1} parent=5 // pred_check
      %p1105 = pneg %p1104
    $region50: #{residual_block_pallas.1} parent=5 // pred_check_branch
      %1107 = sbr.rel (%p1105) target = $region52
    $region51: #{residual_block_pallas.1} parent=5 // pred_region
      %s1108 = ssub.s32 %s12, 2
      // Predicated region
      $region53: #{residual_block_pallas.1} parent=51 // pred_check
        %p1109 = pneg %p172
      $region54: #{residual_block_pallas.1} parent=51 // pred_check_branch
        %1111 = sbr.rel (%p1109) target = $region56
      $region55: #{residual_block_pallas.1} parent=51 // pred_region
        %p1112 = scmp.lt.s32.totalorder %s18, 1
        %s1113 = scalar_select %p1112, %s18, 1
        %s1114 = smul.addr %s1113, 2
        %s1115 = smul.addr %s1114, 8
        %s1116 = scalar_lea.vmem %s6, %s1115
      $region56: #{residual_block_pallas.1} parent=51 // pred_fallthru
        _
    $region52: #{residual_block_pallas.1} parent=5 // pred_fallthru
      _
  $region6: #{residual_block_pallas.1} parent=0 // loop_footer
    %s16 = sadd.s32 1, %s12
  $region7: #{residual_block_pallas.1} parent=0 // loop_footer_branch
    %11 = sbr.rel target = $region3
  $region8: #{residual_block_pallas.1} parent=0 // loop_exit
    _

</llo_original>
